<compile_context>
chip_gen: v5e
topology: v5e:2x2
jax: 0.10.0
libtpu: 0.0.40
codegen_flags: <defaults>
</compile_context>

<pallas_src>
from collections import OrderedDict

import jax
import jax.numpy as jnp
from jax.experimental import pallas as pl
from jax.experimental.pallas import tpu as pltpu


# ----------------------------------------------------------------------------
# Hardware-aware sizing helpers
# ----------------------------------------------------------------------------
def _vmem_capacity_bytes():
    try:
        return int(pltpu.get_tpu_info().vmem_capacity_bytes)
    except Exception:
        return 64 << 20  # conservative (v7x per-TC VMEM); safe everywhere


def _choose_tn(H, OUT, dim, bytes_per_elem, target_bytes):
    """Output-tile width TN: multiple of `dim` (whole (R, dim) rows per tile),
    divides OUT, preferably a multiple of 128 (unmasked lane-dense stores).
    Never returns an over-budget full-OUT tile unless it genuinely fits."""
    if H * OUT * bytes_per_elem <= target_bytes:
        return OUT
    max_cols = max(dim, target_bytes // (H * bytes_per_elem))
    best_aligned, best_any = 0, 0
    k = 1
    while k * dim <= max_cols:
        cand = k * dim
        if OUT % cand == 0:
            best_any = cand
            if cand % 128 == 0:
                best_aligned = cand
        k += 1
    if best_aligned:
        return best_aligned
    # No 128-aligned divisor under budget: allow the full tile only if it is
    # at most 2x the budget; otherwise accept a non-aligned (masked-store)
    # divisor rather than blowing past VMEM.
    if H * OUT * bytes_per_elem <= 2 * target_bytes:
        return OUT
    if best_any:
        return best_any
    return dim  # always divides OUT


# ----------------------------------------------------------------------------
# Kernels
# ----------------------------------------------------------------------------
def _mlp_kernel_factory(n_hidden):
    def kernel(idx_ref, emb_ref, w0_ref, b0_ref, wh_ref, bh_ref, o_ref):
        # idx_ref: scalar-prefetch ref (consumed by the embedding index_map).
        x = emb_ref[0]                                            # (1, E) f32
        x = jnp.maximum(
            jnp.dot(x, w0_ref[...], preferred_element_type=jnp.float32,
                    precision=jax.lax.Precision.HIGHEST) + b0_ref[...], 0.0)
        for li in range(n_hidden):                                # static unroll
            x = jnp.maximum(
                jnp.dot(x, wh_ref[li], preferred_element_type=jnp.float32,
                        precision=jax.lax.Precision.HIGHEST) + bh_ref[li], 0.0)
        o_ref[...] = x.astype(o_ref.dtype)                        # bf16 feature
    return kernel


def qkv_raw_kernel(f_ref, w_ref, b_ref, raw_ref):
    # f_ref (1,H) bf16; w_ref (1,H,TN) bf16; b_ref (1,1,TN) f32.
    # bf16 x bf16 -> f32 natively on the MXU; no in-kernel f32 weight copy.
    raw_ref[0] = jnp.dot(f_ref[...], w_ref[0],
                         preferred_element_type=jnp.float32) + b_ref[0]


def _qkv_raw_norm_kernel_factory(dim, ng):
    def kernel(f_ref, w_ref, b_ref, raw_ref, norm_ref):
        y = jnp.dot(f_ref[...], w_ref[0],
                    preferred_element_type=jnp.float32) + b_ref[0]   # (1, TN) f32
        raw_ref[0] = y
        # Row-wise (dim-wide group) L2 norm.  dim % 128 == 0 here, so every
        # group is a lane-aligned slice: the squared-sum goes to the XLU and
        # the rsqrt to the EUP -- both off the MXU/VPU critical path, and no
        # padded G/G^T constants live in VMEM.
        for g in range(ng):                        # static unroll, ng small
            yg = y[:, g * dim:(g + 1) * dim]       # (1, dim), lane-aligned
            ss = jnp.sum(yg * yg, axis=-1, keepdims=True)
            inv = jax.lax.rsqrt(jnp.maximum(ss, 1e-24))   # F.normalize eps
            norm_ref[0, :, pl.ds(g * dim, dim)] = yg * inv
    return kernel


# ----------------------------------------------------------------------------
# Pallas wrappers
# ----------------------------------------------------------------------------
def mlp_forward(idx, emb_table3, w0t, b0, whT, bh, n_hidden):
    """Fused embedding lookup + full MLP in a single pallas_call.
    idx: int32[1]; emb_table3: (N,1,E); returns features (1, H) in bf16."""
    N, _, E = emb_table3.shape
    H = b0.shape[-1]
    kernel = _mlp_kernel_factory(n_hidden)
    return pl.pallas_call(
        kernel,
        out_shape=jax.ShapeDtypeStruct((1, H), jnp.bfloat16),
        grid_spec=pltpu.PrefetchScalarGridSpec(
            num_scalar_prefetch=1,
            grid=(1,),
            in_specs=[
                pl.BlockSpec((1, 1, E), lambda i, idx_ref: (idx_ref[0], 0, 0)),
                pl.BlockSpec((E, H), lambda i, idx_ref: (0, 0)),
                pl.BlockSpec((1, H), lambda i, idx_ref: (0, 0)),
                pl.BlockSpec(whT.shape, lambda i, idx_ref: (0, 0, 0)),
                pl.BlockSpec(bh.shape, lambda i, idx_ref: (0, 0, 0)),
            ],
            out_specs=pl.BlockSpec((1, H), lambda i, idx_ref: (0, 0)),
        ),
    )(idx, emb_table3, w0t, b0, whT, bh)


def qkv_forward(feat_bf16, wqkvT, bqkvT, dim, want_norm):
    """feat_bf16 (1,H) bf16; wqkvT (depth,H,OUT) bf16; bqkvT (depth,1,OUT) f32.
    Returns (raw, norm_or_None), each (depth, R, dim) with R = OUT // dim."""
    depth, H, OUT = wqkvT.shape
    R = OUT // dim
    cap = _vmem_capacity_bytes()
    # Weight-tile budget: ~cap/8 (8 MiB on v7x's 64 MiB VMEM), capped at
    # 16 MiB on the 128 MiB chips -- bigger buys <2% once the ~0.35us/step
    # overhead is hidden under the multi-us HBM DMA.
    target = min(max(cap // 8, 4 << 20), 16 << 20)
    tn = _choose_tn(H, OUT, dim, wqkvT.dtype.itemsize, target)
    nj = OUT // tn

    fuse_norm = want_norm and (dim % 128 == 0) and (tn % dim == 0)
    n_out = 2 if fuse_norm else 1

    # VMEM footprint: double-buffered weight + bias tiles, output tiles, feat.
    fp = (2 * H * tn * wqkvT.dtype.itemsize      # weight tiles (bf16)
          + 2 * tn * 4                           # bias tiles
          + n_out * 2 * tn * 4                   # raw (+ norm) output tiles
          + 2 * H * feat_bf16.dtype.itemsize
          + (1 << 20))                           # compiler scratch slack
    vmem_limit = int(min(max(32 << 20, fp * 5 // 4), cap - (4 << 20)))

    cparams = pltpu.CompilerParams(
        # depth x OUT tiles are independent; on v7x the parallel axes let the
        # two TensorCores split the dominant weight stream.
        dimension_semantics=("parallel", "parallel"),
        vmem_limit_bytes=vmem_limit,
    )
    flops = 2 * depth * H * OUT + (3 * depth * OUT if fuse_norm else 0)
    cost = pl.CostEstimate(
        flops=flops,
        transcendentals=(depth * R if fuse_norm else 0),
        bytes_accessed=(depth * H * OUT * wqkvT.dtype.itemsize
                        + depth * OUT * 4
                        + n_out * depth * OUT * 4),
    )

    feat_spec = pl.BlockSpec((1, H), lambda d, j: (0, 0))
    w_spec = pl.BlockSpec((1, H, tn), lambda d, j: (d, 0, j))
    b_spec = pl.BlockSpec((1, 1, tn), lambda d, j: (d, 0, j))
    out_spec = pl.BlockSpec((1, 1, tn), lambda d, j: (d, 0, j))
    out_shape = jax.ShapeDtypeStruct((depth, 1, OUT), jnp.float32)

    # TODO(synk): the first weight-tile DMA is still serialized behind the MLP
    # pallas_call; a cross-call prefetch (P10) would hide a few us on v7x.

    if fuse_norm:
        kernel = _qkv_raw_norm_kernel_factory(dim, tn // dim)
        raw, norm = pl.pallas_call(
            kernel,
            out_shape=(out_shape, out_shape),
            grid=(depth, nj),
            in_specs=[feat_spec, w_spec, b_spec],
            out_specs=(out_spec, out_spec),
            compiler_params=cparams,
            cost_estimate=cost,
        )(feat_bf16, wqkvT, bqkvT)
        return raw.reshape(depth, R, dim), norm.reshape(depth, R, dim)

    raw = pl.pallas_call(
        qkv_raw_kernel,
        out_shape=out_shape,
        grid=(depth, nj),
        in_specs=[feat_spec, w_spec, b_spec],
        out_specs=out_spec,
        compiler_params=cparams,
        cost_estimate=cost,
    )(feat_bf16, wqkvT, bqkvT)
    raw3 = raw.reshape(depth, R, dim)
    if not want_norm:
        return raw3, None
    # TODO(synk): for dim not a multiple of 128 the row-wise L2 normalize runs
    # as a plain XLA epilogue (one extra read+write of the raw output, a few
    # percent of the weight-stream bytes) instead of fused group slicing.
    ss = jnp.sum(raw3 * raw3, axis=-1, keepdims=True)
    norm3 = raw3 * jax.lax.rsqrt(jnp.maximum(ss, 1e-24))
    return raw3, norm3


# ----------------------------------------------------------------------------
# Parameter setup (glue, plain JAX)
# ----------------------------------------------------------------------------
def _spectral_normalize(w, n_iter=50):
    # Deterministic power iteration (replaces torch spectral_norm buffers).
    # TODO(synk): torch runs 1 iteration/forward with persistent u/v buffers,
    # so generated weights won't match a PyTorch checkpoint bit-for-bit.
    u = jnp.ones((w.shape[0],), jnp.float32) / jnp.sqrt(float(w.shape[0]))
    for _ in range(n_iter):
        v = w.T @ u
        v = v / jnp.maximum(jnp.linalg.norm(v), 1e-12)
        u = w @ v
        u = u / jnp.maximum(jnp.linalg.norm(u), 1e-12)
    sigma = u @ (w @ v)
    return w / sigma


def _linear_init(key, out_f, in_f):
    k = 1.0 / jnp.sqrt(float(in_f))
    kw, kb = jax.random.split(key)
    w = jax.random.uniform(kw, (out_f, in_f), jnp.float32, -k, k)
    b = jax.random.uniform(kb, (out_f,), jnp.float32, -k, k)
    return w, b


class ViTHyperPallas:
    def __init__(self, n_nodes, embedding_dim, hidden_dim, dim, client_sample,
                 heads=8, dim_head=64, n_hidden=1, depth=6, seed=0):
        self.dim = dim
        self.inner_dim = dim_head * heads
        self.depth = depth
        self.client_sample = client_sample
        self.n_hidden = n_hidden
        self.R = self.inner_dim * 3
        key = jax.random.PRNGKey(seed)
        keys = jax.random.split(key, 2 + n_hidden + depth)

        # Embedding table (torch: N(0,1)).  Stored as (N, 1, E) for row-block DMA.
        emb = jax.random.normal(keys[0], (n_nodes, embedding_dim), jnp.float32)
        self.emb_table3 = emb.reshape(n_nodes, 1, embedding_dim)
        self.emb_table = emb

        # MLP: [spectral_norm(Linear(E,H)), ReLU] + n_hidden*[spectral_norm(Linear(H,H)), ReLU]
        w0, b0 = _linear_init(keys[1], hidden_dim, embedding_dim)
        w0 = _spectral_normalize(w0)
        self.w0t = w0.T                                      # (E, H)
        self.b0 = b0.reshape(1, hidden_dim)
        hid_wT, hid_b = [], []
        for li in range(n_hidden):
            w, b = _linear_init(keys[2 + li], hidden_dim, hidden_dim)
            w = _spectral_normalize(w)
            hid_wT.append(w.T)
            hid_b.append(b)
        if n_hidden > 0:
            self.whT = jnp.stack(hid_wT)                     # (n_hidden, H, H)
            self.bh = jnp.stack(hid_b).reshape(n_hidden, 1, hidden_dim)
        else:  # dummy (never read in-kernel)
            self.whT = jnp.zeros((1, hidden_dim, hidden_dim), jnp.float32)
            self.bh = jnp.zeros((1, 1, hidden_dim), jnp.float32)

        # to_qkv generators: depth x Linear(hidden_dim, dim*inner_dim*3)
        out_f = self.dim * self.inner_dim * 3                # OUT = R * dim
        wqkvT, bqkv = [], []
        for d in range(depth):
            w, b = _linear_init(keys[1 + n_hidden + 1 + d], out_f, hidden_dim)
            wqkvT.append(w.T)                                # (H, OUT)
            bqkv.append(b)
        # bf16 weight storage: halves the dominant HBM stream; f32 accumulate in kernel.
        self.wqkvT = jnp.stack(wqkvT).astype(jnp.bfloat16)   # (depth, H, OUT)
        self.bqkvT = jnp.stack(bqkv).reshape(depth, 1, out_f)  # f32

    # ---- Pallas forward -----------------------------------------------------
    def forward(self, idx, test):
        idx_arr = jnp.asarray([idx], jnp.int32)
        feat = mlp_forward(idx_arr, self.emb_table3, self.w0t, self.b0,
                           self.whT, self.bh, self.n_hidden)   # (1, H) bf16
        key = lambda d: f'transformer.layers.{d}.0.fn.to_qkv.weight'
        if test:
            raw, _ = qkv_forward(feat, self.wqkvT, self.bqkvT, self.dim,
                                 want_norm=False)
            return OrderedDict((key(d), raw[d]) for d in range(self.depth))
        raw, norm = qkv_forward(feat, self.wqkvT, self.bqkvT, self.dim,
                                want_norm=True)
        weights = []
        for _ in range(self.client_sample):          # finetune(): L2-normalized rows
            weights.append(OrderedDict((key(d), norm[d]) for d in range(self.depth)))
        for _ in range(self.client_sample):          # plain generated weights
            weights.append(OrderedDict((key(d), raw[d]) for d in range(self.depth)))
        return weights

    # ---- pure-JAX reference (for correctness check only) --------------------
    def reference(self, idx):
        x = self.emb_table[idx][None, :]
        x = jnp.maximum(jnp.dot(x, self.w0t,
                                precision=jax.lax.Precision.HIGHEST) + self.b0, 0.0)
        for li in range(self.n_hidden):
            x = jnp.maximum(jnp.dot(x, self.whT[li],
                                    precision=jax.lax.Precision.HIGHEST)
                            + self.bh[li], 0.0)
        # Mirror the kernel's bf16 feature / bf16 weight MXU compute.
        xb = x.astype(jnp.bfloat16).astype(jnp.float32)
        wf = self.wqkvT.astype(jnp.float32)
        raws, norms = [], []
        for d in range(self.depth):
            y = (jnp.dot(xb, wf[d], precision=jax.lax.Precision.HIGHEST)
                 + self.bqkvT[d]).reshape(self.R, self.dim)
            raws.append(y)
            ss = jnp.sum(y * y, axis=-1, keepdims=True)
            norms.append(y * jax.lax.rsqrt(jnp.maximum(ss, 1e-24)))
        return jnp.stack(raws), jnp.stack(norms)


# ----------------------------------------------------------------------------
if __name__ == "__main__":
    # Small, forward-consistent shapes; dim is a multiple of 128 so the fused
    # in-kernel normalization path is exercised.
    n_nodes, embedding_dim, hidden_dim = 4, 16, 32
    dim, heads, dim_head = 128, 2, 8         # inner_dim = 16, R = 48, OUT = 6144
    depth, n_hidden, client_sample = 2, 1, 2

    model = ViTHyperPallas(n_nodes, embedding_dim, hidden_dim, dim,
                           client_sample, heads=heads, dim_head=dim_head,
                           n_hidden=n_hidden, depth=depth, seed=0)

    idx = 1
    out_test = model.forward(idx, test=True)      # raw-only path
    out_train = model.forward(idx, test=False)    # list of 2*client_sample dicts
    jax.block_until_ready(jax.tree_util.tree_leaves((out_test, out_train)))

    # Correctness check vs pure-JAX reference.
    ref_raw, ref_norm = model.reference(idx)
    for d in range(depth):
        k = f'transformer.layers.{d}.0.fn.to_qkv.weight'
        assert out_test[k].shape == (model.inner_dim * 3, dim)
        assert jnp.allclose(out_test[k], ref_raw[d], atol=2e-3, rtol=2e-3)
        assert jnp.allclose(out_train[0][k], ref_norm[d], atol=2e-3, rtol=2e-3)
        assert jnp.allclose(out_train[client_sample][k], ref_raw[d],
                            atol=2e-3, rtol=2e-3)
    assert len(out_train) == 2 * client_sample

    print("KERNEL_OK")
</pallas_src>

<mosaic_0001>
module attributes {stable_mosaic.version = 11 : i64} {
  func.func @kernel(%arg0: i32, %arg1: memref<1xi32, #tpu.memory_space<smem>>, %arg2: memref<1x1x16xf32, #tpu.memory_space<vmem>>, %arg3: memref<16x32xf32, #tpu.memory_space<vmem>>, %arg4: memref<1x32xf32, #tpu.memory_space<vmem>>, %arg5: memref<1x32x32xf32, #tpu.memory_space<vmem>>, %arg6: memref<1x1x32xf32, #tpu.memory_space<vmem>>, %arg7: memref<1x32xbf16, #tpu.memory_space<vmem>>) attributes {dimension_semantics = [#tpu.dimension_semantics<arbitrary>], iteration_bounds = array<i64: 1>, scalar_prefetch = 1 : i64, scratch_operands = 0 : i64, tpu.core_type = #tpu.core_type<tc>, window_params = [{transform_indices = @transform_0, window_bounds = array<i64: 1, 1, 16>}, {pipeline_mode = #tpu.pipeline_mode<synchronous>, transform_indices = @transform_1, window_bounds = array<i64: 16, 32>}, {pipeline_mode = #tpu.pipeline_mode<synchronous>, transform_indices = @transform_2, window_bounds = array<i64: 1, 32>}, {pipeline_mode = #tpu.pipeline_mode<synchronous>, transform_indices = @transform_3, window_bounds = array<i64: 1, 32, 32>}, {pipeline_mode = #tpu.pipeline_mode<synchronous>, transform_indices = @transform_4, window_bounds = array<i64: 1, 1, 32>}, {pipeline_mode = #tpu.pipeline_mode<synchronous>, transform_indices = @transform_5, window_bounds = array<i64: 1, 32>}]} {
    %c0 = arith.constant 0 : index
    %c0_0 = arith.constant 0 : index
    %c0_1 = arith.constant 0 : index
    %0 = vector.load %arg2[%c0, %c0_0, %c0_1] : memref<1x1x16xf32, #tpu.memory_space<vmem>>, vector<1x1x16xf32>
    %1 = vector.shape_cast %0 : vector<1x1x16xf32> to vector<1x16xf32>
    %c0_2 = arith.constant 0 : index
    %c0_3 = arith.constant 0 : index
    %2 = vector.load %arg3[%c0_2, %c0_3] : memref<16x32xf32, #tpu.memory_space<vmem>>, vector<16x32xf32>
    %cst = arith.constant dense<0.000000e+00> : vector<1x32xf32>
    %3 = tpu.matmul %1, %2, %cst {dimension_numbers = #tpu.dot_dimension_numbers<[1], [0], [0], [1], [0, 0, 1, 1], [], []>, precision = #tpu.contract_precision<fp32>} : vector<1x16xf32>, vector<16x32xf32>, vector<1x32xf32> -> vector<1x32xf32>
    %c0_4 = arith.constant 0 : index
    %c0_5 = arith.constant 0 : index
    %4 = vector.load %arg4[%c0_4, %c0_5] : memref<1x32xf32, #tpu.memory_space<vmem>>, vector<1x32xf32>
    %5 = arith.addf %3, %4 : vector<1x32xf32>
    %cst_6 = arith.constant 0.000000e+00 : f32
    %6 = vector.broadcast %cst_6 : f32 to vector<1x32xf32>
    %7 = arith.maximumf %5, %6 : vector<1x32xf32>
    %c0_7 = arith.constant 0 : index
    %c0_8 = arith.constant 0 : index
    %c0_9 = arith.constant 0 : index
    %8 = vector.load %arg5[%c0_7, %c0_8, %c0_9] : memref<1x32x32xf32, #tpu.memory_space<vmem>>, vector<1x32x32xf32>
    %9 = vector.shape_cast %8 : vector<1x32x32xf32> to vector<32x32xf32>
    %cst_10 = arith.constant dense<0.000000e+00> : vector<1x32xf32>
    %10 = tpu.matmul %7, %9, %cst_10 {dimension_numbers = #tpu.dot_dimension_numbers<[1], [0], [0], [1], [0, 0, 1, 1], [], []>, precision = #tpu.contract_precision<fp32>} : vector<1x32xf32>, vector<32x32xf32>, vector<1x32xf32> -> vector<1x32xf32>
    %c0_11 = arith.constant 0 : index
    %c0_12 = arith.constant 0 : index
    %c0_13 = arith.constant 0 : index
    %11 = vector.load %arg6[%c0_11, %c0_12, %c0_13] : memref<1x1x32xf32, #tpu.memory_space<vmem>>, vector<1x1x32xf32>
    %12 = vector.shape_cast %11 : vector<1x1x32xf32> to vector<1x32xf32>
    %13 = arith.addf %10, %12 : vector<1x32xf32>
    %cst_14 = arith.constant 0.000000e+00 : f32
    %14 = vector.broadcast %cst_14 : f32 to vector<1x32xf32>
    %15 = arith.maximumf %13, %14 : vector<1x32xf32>
    %16 = arith.truncf %15 : vector<1x32xf32> to vector<1x32xbf16>
    %c0_15 = arith.constant 0 : index
    %c0_16 = arith.constant 0 : index
    %17 = vector.load %arg7[%c0_15, %c0_16] : memref<1x32xbf16, #tpu.memory_space<vmem>>, vector<1x32xbf16>
    tpu.vector_store %arg7[%c0_15, %c0_16], %16 {strides = array<i32>} : memref<1x32xbf16, #tpu.memory_space<vmem>>, vector<1x32xbf16>,
    return
  }
  func.func @transform_0(%arg0: i32, %arg1: memref<1xi32, #tpu.memory_space<smem>>) -> (i32, i32, i32) {
    %c0 = arith.constant 0 : index
    %0 = memref.load %arg1[%c0] : memref<1xi32, #tpu.memory_space<smem>>
    %c0_i32 = arith.constant 0 : i32
    %c0_i32_0 = arith.constant 0 : i32
    %c0_i32_1 = arith.constant 0 : i32
    return %0, %c0_i32, %c0_i32_0 : i32, i32, i32
  }
  func.func @transform_1(%arg0: i32, %arg1: memref<1xi32, #tpu.memory_space<smem>>) -> (i32, i32) {
    %c0_i32 = arith.constant 0 : i32
    %c0_i32_0 = arith.constant 0 : i32
    %c0_i32_1 = arith.constant 0 : i32
    return %c0_i32, %c0_i32_0 : i32, i32
  }
  func.func @transform_2(%arg0: i32, %arg1: memref<1xi32, #tpu.memory_space<smem>>) -> (i32, i32) {
    %c0_i32 = arith.constant 0 : i32
    %c0_i32_0 = arith.constant 0 : i32
    %c0_i32_1 = arith.constant 0 : i32
    return %c0_i32, %c0_i32_0 : i32, i32
  }
  func.func @transform_3(%arg0: i32, %arg1: memref<1xi32, #tpu.memory_space<smem>>) -> (i32, i32, i32) {
    %c0_i32 = arith.constant 0 : i32
    %c0_i32_0 = arith.constant 0 : i32
    %c0_i32_1 = arith.constant 0 : i32
    %c0_i32_2 = arith.constant 0 : i32
    return %c0_i32, %c0_i32_0, %c0_i32_1 : i32, i32, i32
  }
  func.func @transform_4(%arg0: i32, %arg1: memref<1xi32, #tpu.memory_space<smem>>) -> (i32, i32, i32) {
    %c0_i32 = arith.constant 0 : i32
    %c0_i32_0 = arith.constant 0 : i32
    %c0_i32_1 = arith.constant 0 : i32
    %c0_i32_2 = arith.constant 0 : i32
    return %c0_i32, %c0_i32_0, %c0_i32_1 : i32, i32, i32
  }
  func.func @transform_5(%arg0: i32, %arg1: memref<1xi32, #tpu.memory_space<smem>>) -> (i32, i32) {
    %c0_i32 = arith.constant 0 : i32
    %c0_i32_0 = arith.constant 0 : i32
    %c0_i32_1 = arith.constant 0 : i32
    return %c0_i32, %c0_i32_0 : i32, i32
  }
}

</mosaic_0001>

<llo_original>
// kernel: tpu_custom_call.1
$region0: #{tpu_custom_call.1}
  #allocation0 [shape = 'u32[]', space=smem, size = 0x4, offset = 0x4, fixed_abs, tag = 'smem constant byte address 0x4 - core index']
  #allocation1 [shape = 'u32[72,128]{1,0:T(1,128)}', space=vmem, size = 0x9000, scoped, tag = 'internal scratch']
  #allocation2 [shape = 's32[1]{0}', space=sflag, size = 0x4, scoped, tag = 'scoped memory for tpu_custom_call.1']
  #allocation3 [shape = 's32[1]{0:T(128)S(6)}', space=smem, size = 0x200, scoped, tag = 'prefetched SMEM operand 0']
  %s0 = inlined_call_operand.<no memory space> [shape: s32[1], index: 0, kind: input, shape index: {}]
  %s1 = inlined_call_operand.hbm [shape: f32[4,1,16], index: 1, kind: input, shape index: {}]
  %s2 = inlined_call_operand.hbm [shape: f32[16,32], index: 2, kind: input, shape index: {}]
  %s3 = inlined_call_operand.vmem [shape: f32[1,32], index: 3, kind: input, shape index: {}]
  %s4 = inlined_call_operand.hbm [shape: f32[1,32,32], index: 4, kind: input, shape index: {}]
  %s5 = inlined_call_operand.vmem [shape: f32[1,1,32], index: 5, kind: input, shape index: {}]
  %s6 = inlined_call_operand.hbm [shape: bf16[1,32], index: 6, kind: output, shape index: {}]
  %s7 = sld [smem:[#allocation0]]
  $region42: #{tpu_custom_call.1} parent=0
    _
  %s9 = ssub.s32 1, %s7
  %s10 = scalar_select 0, %s9, %s7
  %11 = sst [smem:[#allocation3]] %s0
  $region1: #{tpu_custom_call.1} parent=0
    #allocation4 [shape = 'u8[512]{0}', space=vmem, size = 0x400, scoped, tag = 'input window, operand 1, single buffered']
    #allocation5 [shape = 's32[1]{0}', space=sflag, size = 0x4, scoped, tag = 'scoped memory for tpu_custom_call.1']
    #allocation6 [shape = 's32[1]{0}', space=sflag, size = 0x4, scoped, tag = 'scoped memory for tpu_custom_call.1']
    #allocation7 [shape = 'u8[8192]{0}', space=vmem, size = 0x2000, scoped, tag = 'input window, operand 2, single buffered']
    #allocation8 [shape = 's32[1]{0}', space=sflag, size = 0x4, scoped, tag = 'scoped memory for tpu_custom_call.1']
    #allocation9 [shape = 'u8[16384]{0}', space=vmem, size = 0x4000, scoped, tag = 'input window, operand 4, single buffered']
    #allocation10 [shape = 'u8[512]{0}', space=vmem, size = 0x400, scoped, tag = 'output window, operand 0, single buffered']
    %12 = vsyncpa [#allocation5], 0
    %13 = vsyncpa [#allocation8], 0
    %14 = vsyncpa [#allocation6], 0
    // Predicated region
    $region2: #{tpu_custom_call.1} parent=1 // pred_check
      _
    $region3: #{tpu_custom_call.1} parent=1 // pred_check_branch
      %16 = sbr.rel (0) target = $region5
    $region4: #{tpu_custom_call.1} parent=1 // pred_region
      %s17 = sld [smem:[#allocation3]]
      %19 = vsyncadd [#allocation5], 0
      %s20 = scalar_lea.hbm %s1, %s17
      %s22 = sshll.u32 %s20, 4
      %s23 = int_to_ptr.hbm [resolvable:$true] %s22
      %s24 = sshll.u32 [#allocation4], 4
      %s25 = int_to_ptr.vmem [resolvable:$true] %s24
      %27 = dma.hbm_to_vmem [thread:$0]  %s23, 16, %s25, [#allocation5]
    $region5: #{tpu_custom_call.1} parent=1 // pred_fallthru
      _
    // Predicated region
    $region6: #{tpu_custom_call.1} parent=1 // pred_check
      _
    $region7: #{tpu_custom_call.1} parent=1 // pred_check_branch
      %29 = sbr.rel (0) target = $region9
    $region8: #{tpu_custom_call.1} parent=1 // pred_region
      %31 = vsyncadd [#allocation8], 0
      %s32 = sshll.u32 %s2, 4
      %s33 = int_to_ptr.hbm [resolvable:$true] %s32
      %s34 = sshll.u32 [#allocation7], 4
      %s35 = int_to_ptr.vmem [resolvable:$true] %s34
      %40 = dma.hbm_to_vmem [thread:$0]  %s33, 256, %s35, [#allocation8], 128, 128, 8
    $region9: #{tpu_custom_call.1} parent=1 // pred_fallthru
      _
    // Predicated region
    $region10: #{tpu_custom_call.1} parent=1 // pred_check
      _
    $region11: #{tpu_custom_call.1} parent=1 // pred_check_branch
      %42 = sbr.rel (0) target = $region13
    $region12: #{tpu_custom_call.1} parent=1 // pred_region
      _
    $region13: #{tpu_custom_call.1} parent=1 // pred_fallthru
      _
    // Predicated region
    $region14: #{tpu_custom_call.1} parent=1 // pred_check
      _
    $region15: #{tpu_custom_call.1} parent=1 // pred_check_branch
      %44 = sbr.rel (0) target = $region17
    $region16: #{tpu_custom_call.1} parent=1 // pred_region
      %46 = vsyncadd [#allocation8], 0
      %s47 = sshll.u32 %s4, 4
      %s48 = int_to_ptr.hbm [resolvable:$true] %s47
      %s49 = sshll.u32 [#allocation9], 4
      %s50 = int_to_ptr.vmem [resolvable:$true] %s49
      %55 = dma.hbm_to_vmem [thread:$0]  %s48, 512, %s50, [#allocation8], 128, 128, 8
    $region17: #{tpu_custom_call.1} parent=1 // pred_fallthru
      _
    // Predicated region
    $region18: #{tpu_custom_call.1} parent=1 // pred_check
      _
    $region19: #{tpu_custom_call.1} parent=1 // pred_check_branch
      %57 = sbr.rel (0) target = $region21
    $region20: #{tpu_custom_call.1} parent=1 // pred_region
      _
    $region21: #{tpu_custom_call.1} parent=1 // pred_fallthru
      _
    // Predicated region
    $region22: #{tpu_custom_call.1} parent=1 // pred_check
      _
    $region23: #{tpu_custom_call.1} parent=1 // pred_check_branch
      %59 = sbr.rel (0) target = $region25
    $region24: #{tpu_custom_call.1} parent=1 // pred_region
      %61 = dma.done [#allocation5], 16
    $region25: #{tpu_custom_call.1} parent=1 // pred_fallthru
      _
    // Predicated region
    $region26: #{tpu_custom_call.1} parent=1 // pred_check
      _
    $region27: #{tpu_custom_call.1} parent=1 // pred_check_branch
      %63 = sbr.rel (0) target = $region29
    $region28: #{tpu_custom_call.1} parent=1 // pred_region
      %65 = dma.done [#allocation8], 256
    $region29: #{tpu_custom_call.1} parent=1 // pred_fallthru
      _
    // Predicated region
    $region30: #{tpu_custom_call.1} parent=1 // pred_check
      _
    $region31: #{tpu_custom_call.1} parent=1 // pred_check_branch
      %67 = sbr.rel (0) target = $region33
    $region32: #{tpu_custom_call.1} parent=1 // pred_region
      %69 = dma.done [#allocation8], 512
    $region33: #{tpu_custom_call.1} parent=1 // pred_fallthru
      _
    %s70 = sld [smem:[#allocation3]]
    %v71 = vld [vmem:[#allocation4] sm:$0x1]
    %v72 = vld [vmem:[#allocation7] sm:$0xff]
    %v73 = vld [vmem:[#allocation7 + $0x8] sm:$0xff]
    %v74 = vld [vmem:[%s3] sm:$0x1]
    %vm75 = vcmask 130048
    %v77 = vsel %vm75, %v71, 0
    %79 = vmatpush.msra.mxu0 0.0
    %80 = vmatpush.msra.mxu0 0.0
    %81 = vmatpush.msra.mxu0 0.0
    %82 = vmatpush.msra.mxu0 0.0
    %83 = vmatpush.msra.mxu0 0.0
    %84 = vmatpush.msra.mxu0 0.0
    %85 = vmatpush.msra.mxu0 0.0
    %86 = vmatpush.msra.mxu0 0.0
    %87 = vmatpush.msra.mxu0 0.0
    %88 = vmatpush.msra.mxu0 0.0
    %89 = vmatpush.msra.mxu0 0.0
    %90 = vmatpush.msra.mxu0 0.0
    %91 = vmatpush.msra.mxu0 0.0
    %92 = vmatpush.msra.mxu0 0.0
    %v93 = vand.u32 %v73, 4294901760
    %94 = vmatpush.msra.mxu0 %v93
    %v95 = vand.u32 %v72, 4294901760
    %96 = vmatpush.msra.mxu0 %v95
    %v97 = vand.u32 %v77, 4294901760
    %v98 = vsub.f32 %v77, %v97
    %v99 = vand.u32 %v98, 4294901760
    %v100 = vsub.f32 %v98, %v99
    %v101 = vand.u32 %v100, 4294901760
    %102 = vmatmul.f32.gmra.mxu0 %v101
    %v103 = vpop.f32.mrf.mxu0
    %v104 = vadd.f32 %v74, %v103
    %105 = vdwg.mxu0
    %106 = vmatpush.msra.mxu0 0.0
    %107 = vmatpush.msra.mxu0 0.0
    %108 = vmatpush.msra.mxu0 0.0
    %109 = vmatpush.msra.mxu0 0.0
    %110 = vmatpush.msra.mxu0 0.0
    %111 = vmatpush.msra.mxu0 0.0
    %112 = vmatpush.msra.mxu0 0.0
    %113 = vmatpush.msra.mxu0 0.0
    %114 = vmatpush.msra.mxu0 0.0
    %115 = vmatpush.msra.mxu0 0.0
    %116 = vmatpush.msra.mxu0 0.0
    %117 = vmatpush.msra.mxu0 0.0
    %118 = vmatpush.msra.mxu0 0.0
    %119 = vmatpush.msra.mxu0 0.0
    %v120 = vand.u32 %v73, 4294901760
    %v121 = vsub.f32 %v73, %v120
    %v122 = vand.u32 %v121, 4294901760
    %v123 = vsub.f32 %v121, %v122
    %v124 = vand.u32 %v123, 4294901760
    %125 = vmatpush.msra.mxu0 %v124
    %v126 = vand.u32 %v72, 4294901760
    %v127 = vsub.f32 %v72, %v126
    %v128 = vand.u32 %v127, 4294901760
    %v129 = vsub.f32 %v127, %v128
    %v130 = vand.u32 %v129, 4294901760
    %131 = vmatpush.msra.mxu0 %v130
    %v132 = vand.u32 %v77, 4294901760
    %133 = vmatmul.f32.gmra.mxu0 %v132
    %v134 = vpop.f32.mrf.mxu0
    %v135 = vadd.f32 %v104, %v134
    %136 = vdwg.mxu0
    %137 = vmatpush.msra.mxu0 0.0
    %138 = vmatpush.msra.mxu0 0.0
    %139 = vmatpush.msra.mxu0 0.0
    %140 = vmatpush.msra.mxu0 0.0
    %141 = vmatpush.msra.mxu0 0.0
    %142 = vmatpush.msra.mxu0 0.0
    %143 = vmatpush.msra.mxu0 0.0
    %144 = vmatpush.msra.mxu0 0.0
    %145 = vmatpush.msra.mxu0 0.0
    %146 = vmatpush.msra.mxu0 0.0
    %147 = vmatpush.msra.mxu0 0.0
    %148 = vmatpush.msra.mxu0 0.0
    %149 = vmatpush.msra.mxu0 0.0
    %150 = vmatpush.msra.mxu0 0.0
    %v151 = vand.u32 %v73, 4294901760
    %v152 = vsub.f32 %v73, %v151
    %153 = vmatpush.msra.mxu0 %v152
    %v154 = vand.u32 %v72, 4294901760
    %v155 = vsub.f32 %v72, %v154
    %156 = vmatpush.msra.mxu0 %v155
    %v157 = vand.u32 %v77, 4294901760
    %v158 = vsub.f32 %v77, %v157
    %159 = vmatmul.f32.gmra.mxu0 %v158
    %v160 = vpop.f32.mrf.mxu0
    %v161 = vadd.f32 %v135, %v160
    %162 = vdwg.mxu0
    %163 = vmatpush.msra.mxu0 0.0
    %164 = vmatpush.msra.mxu0 0.0
    %165 = vmatpush.msra.mxu0 0.0
    %166 = vmatpush.msra.mxu0 0.0
    %167 = vmatpush.msra.mxu0 0.0
    %168 = vmatpush.msra.mxu0 0.0
    %169 = vmatpush.msra.mxu0 0.0
    %170 = vmatpush.msra.mxu0 0.0
    %171 = vmatpush.msra.mxu0 0.0
    %172 = vmatpush.msra.mxu0 0.0
    %173 = vmatpush.msra.mxu0 0.0
    %174 = vmatpush.msra.mxu0 0.0
    %175 = vmatpush.msra.mxu0 0.0
    %176 = vmatpush.msra.mxu0 0.0
    %v177 = vand.u32 %v73, 4294901760
    %178 = vmatpush.msra.mxu0 %v177
    %v179 = vand.u32 %v72, 4294901760
    %180 = vmatpush.msra.mxu0 %v179
    %v181 = vand.u32 %v77, 4294901760
    %v182 = vsub.f32 %v77, %v181
    %v183 = vand.u32 %v182, 4294901760
    %184 = vmatmul.f32.gmra.mxu0 %v183
    %v185 = vpop.f32.mrf.mxu0
    %v186 = vadd.f32 %v161, %v185
    %187 = vdwg.mxu0
    %188 = vmatpush.msra.mxu0 0.0
    %189 = vmatpush.msra.mxu0 0.0
    %190 = vmatpush.msra.mxu0 0.0
    %191 = vmatpush.msra.mxu0 0.0
    %192 = vmatpush.msra.mxu0 0.0
    %193 = vmatpush.msra.mxu0 0.0
    %194 = vmatpush.msra.mxu0 0.0
    %195 = vmatpush.msra.mxu0 0.0
    %196 = vmatpush.msra.mxu0 0.0
    %197 = vmatpush.msra.mxu0 0.0
    %198 = vmatpush.msra.mxu0 0.0
    %199 = vmatpush.msra.mxu0 0.0
    %200 = vmatpush.msra.mxu0 0.0
    %201 = vmatpush.msra.mxu0 0.0
    %v202 = vand.u32 %v73, 4294901760
    %v203 = vsub.f32 %v73, %v202
    %v204 = vand.u32 %v203, 4294901760
    %205 = vmatpush.msra.mxu0 %v204
    %v206 = vand.u32 %v72, 4294901760
    %v207 = vsub.f32 %v72, %v206
    %v208 = vand.u32 %v207, 4294901760
    %209 = vmatpush.msra.mxu0 %v208
    %v210 = vand.u32 %v77, 4294901760
    %211 = vmatmul.f32.gmra.mxu0 %v210
    %v212 = vpop.f32.mrf.mxu0
    %v213 = vadd.f32 %v186, %v212
    %214 = vdwg.mxu0
    %215 = vmatpush.msra.mxu0 0.0
    %216 = vmatpush.msra.mxu0 0.0
    %217 = vmatpush.msra.mxu0 0.0
    %218 = vmatpush.msra.mxu0 0.0
    %219 = vmatpush.msra.mxu0 0.0
    %220 = vmatpush.msra.mxu0 0.0
    %221 = vmatpush.msra.mxu0 0.0
    %222 = vmatpush.msra.mxu0 0.0
    %223 = vmatpush.msra.mxu0 0.0
    %224 = vmatpush.msra.mxu0 0.0
    %225 = vmatpush.msra.mxu0 0.0
    %226 = vmatpush.msra.mxu0 0.0
    %227 = vmatpush.msra.mxu0 0.0
    %228 = vmatpush.msra.mxu0 0.0
    %v229 = vand.u32 %v73, 4294901760
    %230 = vmatpush.msra.mxu0 %v229
    %v231 = vand.u32 %v72, 4294901760
    %232 = vmatpush.msra.mxu0 %v231
    %v233 = vand.u32 %v77, 4294901760
    %234 = vmatmul.f32.gmra.mxu0 %v233
    %v235 = vpop.f32.mrf.mxu0
    %v236 = vadd.f32 %v213, %v235
    %237 = vdwg.mxu0
    %v238 = vmax.f32 %v236, 0.0
    %v239 = vld [vmem:[#allocation9] sm:$0xff]
    %v240 = vld [vmem:[#allocation9 + $0x8] sm:$0xff]
    %v241 = vld [vmem:[#allocation9 + $0x10] sm:$0xff]
    %v242 = vld [vmem:[#allocation9 + $0x18] sm:$0xff]
    %v243 = vld [vmem:[%s5] sm:$0x1]
    %vm244 = vcmask 261120
    %v246 = vsel %vm244, %v238, 0
    %248 = vmatpush.msra.mxu0 0.0
    %249 = vmatpush.msra.mxu0 0.0
    %250 = vmatpush.msra.mxu0 0.0
    %251 = vmatpush.msra.mxu0 0.0
    %252 = vmatpush.msra.mxu0 0.0
    %253 = vmatpush.msra.mxu0 0.0
    %254 = vmatpush.msra.mxu0 0.0
    %255 = vmatpush.msra.mxu0 0.0
    %256 = vmatpush.msra.mxu0 0.0
    %257 = vmatpush.msra.mxu0 0.0
    %258 = vmatpush.msra.mxu0 0.0
    %259 = vmatpush.msra.mxu0 0.0
    %v260 = vand.u32 %v242, 4294901760
    %261 = vmatpush.msra.mxu0 %v260
    %v262 = vand.u32 %v241, 4294901760
    %263 = vmatpush.msra.mxu0 %v262
    %v264 = vand.u32 %v240, 4294901760
    %265 = vmatpush.msra.mxu0 %v264
    %v266 = vand.u32 %v239, 4294901760
    %267 = vmatpush.msra.mxu0 %v266
    %v268 = vand.u32 %v246, 4294901760
    %v269 = vsub.f32 %v246, %v268
    %v270 = vand.u32 %v269, 4294901760
    %v271 = vsub.f32 %v269, %v270
    %v272 = vand.u32 %v271, 4294901760
    %273 = vmatmul.f32.gmra.mxu0 %v272
    %v274 = vpop.f32.mrf.mxu0
    %v275 = vadd.f32 %v243, %v274
    %276 = vdwg.mxu0
    %277 = vmatpush.msra.mxu0 0.0
    %278 = vmatpush.msra.mxu0 0.0
    %279 = vmatpush.msra.mxu0 0.0
    %280 = vmatpush.msra.mxu0 0.0
    %281 = vmatpush.msra.mxu0 0.0
    %282 = vmatpush.msra.mxu0 0.0
    %283 = vmatpush.msra.mxu0 0.0
    %284 = vmatpush.msra.mxu0 0.0
    %285 = vmatpush.msra.mxu0 0.0
    %286 = vmatpush.msra.mxu0 0.0
    %287 = vmatpush.msra.mxu0 0.0
    %288 = vmatpush.msra.mxu0 0.0
    %v289 = vand.u32 %v242, 4294901760
    %v290 = vsub.f32 %v242, %v289
    %v291 = vand.u32 %v290, 4294901760
    %v292 = vsub.f32 %v290, %v291
    %v293 = vand.u32 %v292, 4294901760
    %294 = vmatpush.msra.mxu0 %v293
    %v295 = vand.u32 %v241, 4294901760
    %v296 = vsub.f32 %v241, %v295
    %v297 = vand.u32 %v296, 4294901760
    %v298 = vsub.f32 %v296, %v297
    %v299 = vand.u32 %v298, 4294901760
    %300 = vmatpush.msra.mxu0 %v299
    %v301 = vand.u32 %v240, 4294901760
    %v302 = vsub.f32 %v240, %v301
    %v303 = vand.u32 %v302, 4294901760
    %v304 = vsub.f32 %v302, %v303
    %v305 = vand.u32 %v304, 4294901760
    %306 = vmatpush.msra.mxu0 %v305
    %v307 = vand.u32 %v239, 4294901760
    %v308 = vsub.f32 %v239, %v307
    %v309 = vand.u32 %v308, 4294901760
    %v310 = vsub.f32 %v308, %v309
    %v311 = vand.u32 %v310, 4294901760
    %312 = vmatpush.msra.mxu0 %v311
    %v313 = vand.u32 %v246, 4294901760
    %314 = vmatmul.f32.gmra.mxu0 %v313
    %v315 = vpop.f32.mrf.mxu0
    %v316 = vadd.f32 %v275, %v315
    %317 = vdwg.mxu0
    %318 = vmatpush.msra.mxu0 0.0
    %319 = vmatpush.msra.mxu0 0.0
    %320 = vmatpush.msra.mxu0 0.0
    %321 = vmatpush.msra.mxu0 0.0
    %322 = vmatpush.msra.mxu0 0.0
    %323 = vmatpush.msra.mxu0 0.0
    %324 = vmatpush.msra.mxu0 0.0
    %325 = vmatpush.msra.mxu0 0.0
    %326 = vmatpush.msra.mxu0 0.0
    %327 = vmatpush.msra.mxu0 0.0
    %328 = vmatpush.msra.mxu0 0.0
    %329 = vmatpush.msra.mxu0 0.0
    %v330 = vand.u32 %v242, 4294901760
    %v331 = vsub.f32 %v242, %v330
    %332 = vmatpush.msra.mxu0 %v331
    %v333 = vand.u32 %v241, 4294901760
    %v334 = vsub.f32 %v241, %v333
    %335 = vmatpush.msra.mxu0 %v334
    %v336 = vand.u32 %v240, 4294901760
    %v337 = vsub.f32 %v240, %v336
    %338 = vmatpush.msra.mxu0 %v337
    %v339 = vand.u32 %v239, 4294901760
    %v340 = vsub.f32 %v239, %v339
    %341 = vmatpush.msra.mxu0 %v340
    %v342 = vand.u32 %v246, 4294901760
    %v343 = vsub.f32 %v246, %v342
    %344 = vmatmul.f32.gmra.mxu0 %v343
    %v345 = vpop.f32.mrf.mxu0
    %v346 = vadd.f32 %v316, %v345
    %347 = vdwg.mxu0
    %348 = vmatpush.msra.mxu0 0.0
    %349 = vmatpush.msra.mxu0 0.0
    %350 = vmatpush.msra.mxu0 0.0
    %351 = vmatpush.msra.mxu0 0.0
    %352 = vmatpush.msra.mxu0 0.0
    %353 = vmatpush.msra.mxu0 0.0
    %354 = vmatpush.msra.mxu0 0.0
    %355 = vmatpush.msra.mxu0 0.0
    %356 = vmatpush.msra.mxu0 0.0
    %357 = vmatpush.msra.mxu0 0.0
    %358 = vmatpush.msra.mxu0 0.0
    %359 = vmatpush.msra.mxu0 0.0
    %v360 = vand.u32 %v242, 4294901760
    %361 = vmatpush.msra.mxu0 %v360
    %v362 = vand.u32 %v241, 4294901760
    %363 = vmatpush.msra.mxu0 %v362
    %v364 = vand.u32 %v240, 4294901760
    %365 = vmatpush.msra.mxu0 %v364
    %v366 = vand.u32 %v239, 4294901760
    %367 = vmatpush.msra.mxu0 %v366
    %v368 = vand.u32 %v246, 4294901760
    %v369 = vsub.f32 %v246, %v368
    %v370 = vand.u32 %v369, 4294901760
    %371 = vmatmul.f32.gmra.mxu0 %v370
    %v372 = vpop.f32.mrf.mxu0
    %v373 = vadd.f32 %v346, %v372
    %374 = vdwg.mxu0
    %375 = vmatpush.msra.mxu0 0.0
    %376 = vmatpush.msra.mxu0 0.0
    %377 = vmatpush.msra.mxu0 0.0
    %378 = vmatpush.msra.mxu0 0.0
    %379 = vmatpush.msra.mxu0 0.0
    %380 = vmatpush.msra.mxu0 0.0
    %381 = vmatpush.msra.mxu0 0.0
    %382 = vmatpush.msra.mxu0 0.0
    %383 = vmatpush.msra.mxu0 0.0
    %384 = vmatpush.msra.mxu0 0.0
    %385 = vmatpush.msra.mxu0 0.0
    %386 = vmatpush.msra.mxu0 0.0
    %v387 = vand.u32 %v242, 4294901760
    %v388 = vsub.f32 %v242, %v387
    %v389 = vand.u32 %v388, 4294901760
    %390 = vmatpush.msra.mxu0 %v389
    %v391 = vand.u32 %v241, 4294901760
    %v392 = vsub.f32 %v241, %v391
    %v393 = vand.u32 %v392, 4294901760
    %394 = vmatpush.msra.mxu0 %v393
    %v395 = vand.u32 %v240, 4294901760
    %v396 = vsub.f32 %v240, %v395
    %v397 = vand.u32 %v396, 4294901760
    %398 = vmatpush.msra.mxu0 %v397
    %v399 = vand.u32 %v239, 4294901760
    %v400 = vsub.f32 %v239, %v399
    %v401 = vand.u32 %v400, 4294901760
    %402 = vmatpush.msra.mxu0 %v401
    %v403 = vand.u32 %v246, 4294901760
    %404 = vmatmul.f32.gmra.mxu0 %v403
    %v405 = vpop.f32.mrf.mxu0
    %v406 = vadd.f32 %v373, %v405
    %407 = vdwg.mxu0
    %408 = vmatpush.msra.mxu0 0.0
    %409 = vmatpush.msra.mxu0 0.0
    %410 = vmatpush.msra.mxu0 0.0
    %411 = vmatpush.msra.mxu0 0.0
    %412 = vmatpush.msra.mxu0 0.0
    %413 = vmatpush.msra.mxu0 0.0
    %414 = vmatpush.msra.mxu0 0.0
    %415 = vmatpush.msra.mxu0 0.0
    %416 = vmatpush.msra.mxu0 0.0
    %417 = vmatpush.msra.mxu0 0.0
    %418 = vmatpush.msra.mxu0 0.0
    %419 = vmatpush.msra.mxu0 0.0
    %v420 = vand.u32 %v242, 4294901760
    %421 = vmatpush.msra.mxu0 %v420
    %v422 = vand.u32 %v241, 4294901760
    %423 = vmatpush.msra.mxu0 %v422
    %v424 = vand.u32 %v240, 4294901760
    %425 = vmatpush.msra.mxu0 %v424
    %v426 = vand.u32 %v239, 4294901760
    %427 = vmatpush.msra.mxu0 %v426
    %v428 = vand.u32 %v246, 4294901760
    %429 = vmatmul.f32.gmra.mxu0 %v428
    %v430 = vpop.f32.mrf.mxu0
    %v431 = vadd.f32 %v406, %v430
    %432 = vdwg.mxu0
    %v433 = vmax.f32 %v431, 0.0
    %v434 = vpack.c.bf16 %v433, %v433
    %vm435 = vcmask 253952
    %vm436 = vsmask.f32 256
    %vm437 = vmand %vm435, %vm436
    %v438 = vld [vmem:[#allocation10] sm:$0x1]
    %v439 = vsel %vm437, %v434, %v438
    %440 = vst [vmem:[#allocation10] sm:$0x1] %v439
    // Predicated region
    $region34: #{tpu_custom_call.1} parent=1 // pred_check
      _
    $region35: #{tpu_custom_call.1} parent=1 // pred_check_branch
      %442 = sbr.rel (0) target = $region37
    $region36: #{tpu_custom_call.1} parent=1 // pred_region
      %444 = vsyncadd [#allocation6], 0
      %s446 = sshll.u32 [#allocation10], 4
      %s447 = int_to_ptr.vmem [resolvable:$true] %s446
      %s448 = sshll.u32 %s6, 4
      %s449 = int_to_ptr.hbm [resolvable:$true] %s448
      %451 = dma.vmem_to_hbm [thread:$0]  %s447, 16, %s449, [#allocation6]
    $region37: #{tpu_custom_call.1} parent=1 // pred_fallthru
      _
    // Predicated region
    $region38: #{tpu_custom_call.1} parent=1 // pred_check
      _
    $region39: #{tpu_custom_call.1} parent=1 // pred_check_branch
      %453 = sbr.rel (0) target = $region41
    $region40: #{tpu_custom_call.1} parent=1 // pred_region
      %455 = dma.done [#allocation6], 16
    $region41: #{tpu_custom_call.1} parent=1 // pred_fallthru
      _
    %456 = vsyncpa [#allocation5], 1
    %457 = vsyncpa [#allocation8], 1
    %458 = vsyncpa [#allocation6], 1

</llo_original>
